<compile_context>
chip_gen: v6e
topology: v6e:2x2x1
jax: 0.10.0
libtpu: 0.0.40
codegen_flags: <defaults>
</compile_context>

<pallas_src>
import jax
import jax.numpy as jnp
from jax.experimental import pallas as pl
from jax.experimental.pallas import tpu as pltpu


HIDDEN = 100           # fixed by the module definition
LANE = 128             # TPU lane width
DEFAULT_BLOCK_BATCH = 1024


def _round_up(n, m):
    return ((n + m - 1) // m) * m


def _pad2d(a, rows, cols):
    pr = rows - a.shape[0]
    pc = cols - a.shape[1]
    if pr == 0 and pc == 0:
        return a
    return jnp.pad(a, ((0, pr), (0, pc)))


def _qr_mlp_kernel(x_ref, w1_ref, b1_ref, w2_ref, b2_ref, w3_ref, out_ref):
    # Layer 1: Linear(F -> H_pad) + bias + ReLU (bias/ReLU in f32 on the VPU).
    h1 = jnp.dot(x_ref[...], w1_ref[...], preferred_element_type=jnp.float32)
    h1 = jnp.maximum(h1 + b1_ref[...], 0.0)
    # Layer 2: Linear(H_pad -> H_pad) + bias + ReLU.
    h2 = jnp.dot(h1.astype(w2_ref.dtype), w2_ref[...],
                 preferred_element_type=jnp.float32)
    h2 = jnp.maximum(h2 + b2_ref[...], 0.0)
    # Layer 3: Linear(H_pad -> O_pad), no bias.
    out_ref[...] = jnp.dot(h2.astype(w3_ref.dtype), w3_ref[...],
                           preferred_element_type=jnp.float32
                           ).astype(out_ref.dtype)


def prepare_qr_context_params(params, *, use_bf16=True):
    """Pad weights to lane-dense shapes and cast ONCE (hoist out of the step loop).

    params: dict with w1 (F,100), b1 (1,100), w2 (100,100), b2 (1,100),
            w3 (100, num_actions*num_quants) -- stored (in,out), i.e. the
            transpose of PyTorch's nn.Linear weight layout.

    Zero padding keeps the math exact: padded hidden columns get zero weights +
    zero bias (ReLU(0+0)=0), padded w2/w3 rows are zero, padded output columns
    are sliced off in the wrapper.  Biases stay f32 (bias-add/ReLU run in f32);
    only the MXU operands are optionally bf16 (f32 accumulation in-kernel).
    """
    n_features = params["w1"].shape[0]
    out_dim = params["w3"].shape[1]
    h_pad = _round_up(HIDDEN, LANE)
    o_pad = _round_up(out_dim, LANE)
    w_dtype = jnp.bfloat16 if use_bf16 else jnp.float32
    return {
        "w1": _pad2d(params["w1"], n_features, h_pad).astype(w_dtype),
        "b1": _pad2d(params["b1"], 1, h_pad).astype(jnp.float32),
        "w2": _pad2d(params["w2"], h_pad, h_pad).astype(w_dtype),
        "b2": _pad2d(params["b2"], 1, h_pad).astype(jnp.float32),
        "w3": _pad2d(params["w3"], h_pad, o_pad).astype(w_dtype),
        "n_features": n_features,
        "out_dim": out_dim,
    }


def qr_context_forward(x, prepared, num_actions, num_quants, *,
                       block_batch=DEFAULT_BLOCK_BATCH,
                       out_dtype=jnp.float32):
    """Runs the QRContext MLP via a single fused, batch-tiled Pallas kernel.

    x: (batch, n_features)
    prepared: output of prepare_qr_context_params (padded / pre-cast weights).
    returns: (batch, num_actions, num_quants) in out_dtype.
    """
    w1, b1, w2, b2, w3 = (prepared["w1"], prepared["b1"], prepared["w2"],
                          prepared["b2"], prepared["w3"])
    n_features = prepared["n_features"]
    out_dim = prepared["out_dim"]
    assert out_dim == num_actions * num_quants
    batch = x.shape[0]
    assert x.shape == (batch, n_features)

    mxu_dtype = w1.dtype
    h_pad = w2.shape[0]
    o_pad = w3.shape[1]

    # Cast x to the MXU operand dtype *before* any padding copy (halves the
    # streamed input bytes on the bf16 path, and halves any residual pad pass).
    x = x.astype(mxu_dtype)

    # Sublane alignment: bf16 packs 16 rows per vreg, f32 packs 8.
    align = 16 if jnp.dtype(mxu_dtype).itemsize == 2 else 8

    # Batch tile: as large as possible to amortize the ~0.35us per-step cost,
    # but capped so moderate/large batches produce >=2 grid steps (both v7x
    # TensorCores get work under dimension_semantics=("parallel",)).
    if batch >= 4 * align:
        tb_cap = _round_up(pl.cdiv(batch, 2), align)
    else:
        tb_cap = _round_up(batch, align)
    tb = _round_up(max(1, min(block_batch, tb_cap)), align)

    # Pad batch only to the sublane alignment (cheap); the trailing grid block
    # may be partial -- out-of-range rows are masked on store and sliced off.
    b_pad = _round_up(batch, align)
    if b_pad != batch:
        x = jnp.pad(x, ((0, b_pad - batch), (0, 0)))
    grid = (pl.cdiv(b_pad, tb),)

    # Advisory cost for XLA scheduling around the custom call.
    flops = 2 * batch * (n_features * HIDDEN + HIDDEN * HIDDEN + HIDDEN * out_dim)
    bytes_accessed = (
        int(x.size) * jnp.dtype(mxu_dtype).itemsize
        + b_pad * o_pad * jnp.dtype(out_dtype).itemsize
        + sum(int(a.size) * a.dtype.itemsize for a in (w1, b1, w2, b2, w3)))
    cost = pl.CostEstimate(flops=int(flops), transcendentals=0,
                           bytes_accessed=int(bytes_accessed))

    # VMEM budget check (matters on v5e's 16 MiB default scoped limit and v7x's
    # 64 MiB physical VMEM): double-buffered streamed x/out tiles + resident
    # weights (counted x2 conservatively) + f32 intermediates + slack.
    stream_tile_bytes = (tb * n_features * jnp.dtype(mxu_dtype).itemsize
                         + tb * o_pad * jnp.dtype(out_dtype).itemsize)
    weight_bytes = sum(int(a.size) * a.dtype.itemsize
                       for a in (w1, b1, w2, b2, w3))
    vmem_est = (2 * stream_tile_bytes + 2 * weight_bytes
                + 2 * tb * h_pad * 4 + (2 << 20))
    vmem_limit = int(min(64 << 20, max(32 << 20, 2 * vmem_est)))

    out = pl.pallas_call(
        _qr_mlp_kernel,
        out_shape=jax.ShapeDtypeStruct((b_pad, o_pad), out_dtype),
        grid_spec=pl.GridSpec(
            grid=grid,
            in_specs=[
                # x: streamed per batch tile; feature dim is NOT lane-padded
                # (block last dim == full array dim, which is legal) so we only
                # move the real input bytes.
                pl.BlockSpec((tb, n_features), lambda i: (i, 0)),
                # Weights / biases: constant block index -> VMEM-resident
                # across all batch tiles.
                pl.BlockSpec((n_features, h_pad), lambda i: (0, 0)),
                pl.BlockSpec((1, h_pad), lambda i: (0, 0)),
                pl.BlockSpec((h_pad, h_pad), lambda i: (0, 0)),
                pl.BlockSpec((1, h_pad), lambda i: (0, 0)),
                pl.BlockSpec((h_pad, o_pad), lambda i: (0, 0)),
            ],
            # Output stays lane-dense (o_pad multiple of 128) -> unmasked vst.
            out_specs=pl.BlockSpec((tb, o_pad), lambda i: (i, 0)),
        ),
        compiler_params=pltpu.CompilerParams(
            dimension_semantics=("parallel",),
            vmem_limit_bytes=vmem_limit),
        cost_estimate=cost,
    )(x, w1, b1, w2, b2, w3)

    out = out[:batch, :out_dim]
    return out.reshape(batch, num_actions, num_quants)


def init_qr_context_params(key, n_features, num_actions, num_quants,
                           mean_prior, std_prior):
    """Deterministic normal(mean_prior, std_prior) init, mirroring init_weights."""
    out_dim = num_actions * num_quants
    k1, k2, k3, k4, k5 = jax.random.split(key, 5)
    # Stored as (in_dim, out_dim) == PyTorch weight transposed.
    w1 = mean_prior + std_prior * jax.random.normal(k1, (n_features, HIDDEN), jnp.float32)
    b1 = mean_prior + std_prior * jax.random.normal(k2, (1, HIDDEN), jnp.float32)
    w2 = mean_prior + std_prior * jax.random.normal(k3, (HIDDEN, HIDDEN), jnp.float32)
    b2 = mean_prior + std_prior * jax.random.normal(k4, (1, HIDDEN), jnp.float32)
    w3 = mean_prior + std_prior * jax.random.normal(k5, (HIDDEN, out_dim), jnp.float32)
    return {"w1": w1, "b1": b1, "w2": w2, "b2": b2, "w3": w3}


def _reference_forward(x, params, num_actions, num_quants):
    """Pure-JAX f32 reference of the same forward pass (for sanity checking)."""
    h1 = jnp.maximum(x @ params["w1"] + params["b1"], 0.0)
    h2 = jnp.maximum(h1 @ params["w2"] + params["b2"], 0.0)
    y = h2 @ params["w3"]
    return y.reshape(x.shape[0], num_actions, num_quants)


if __name__ == "__main__":
    # Small, module-consistent shapes.
    batch = 8
    n_features = 32
    num_actions = 4
    num_quants = 8
    mean_prior = 0.0
    std_prior = 0.1

    key = jax.random.PRNGKey(0)
    kx, kp = jax.random.split(key)

    x = jax.random.normal(kx, (batch, n_features), jnp.float32)
    params = init_qr_context_params(kp, n_features, num_actions, num_quants,
                                    mean_prior, std_prior)
    ref = _reference_forward(x, params, num_actions, num_quants)

    # f32 path: numerically exact vs. reference (padding only adds zeros).
    prep_f32 = prepare_qr_context_params(params, use_bf16=False)
    out_f32 = qr_context_forward(x, prep_f32, num_actions, num_quants)
    out_f32 = jax.block_until_ready(out_f32)
    assert out_f32.shape == (batch, num_actions, num_quants)
    assert jnp.allclose(out_f32, ref, atol=1e-5, rtol=1e-5)

    # Default bf16-operand path (f32 accumulation): halves streamed HBM bytes.
    prep_bf16 = prepare_qr_context_params(params)   # use_bf16=True by default
    out_bf16 = qr_context_forward(x, prep_bf16, num_actions, num_quants)
    out_bf16 = jax.block_until_ready(out_bf16)
    assert out_bf16.shape == (batch, num_actions, num_quants)
    assert jnp.allclose(out_bf16, ref, atol=1e-1, rtol=1e-1)

    print("KERNEL_OK")
</pallas_src>

<mosaic_0001>
module attributes {stable_mosaic.version = 11 : i64} {
  func.func @_qr_mlp_kernel(%arg0: i32, %arg1: memref<8x32xf32, #tpu.memory_space<vmem>>, %arg2: memref<32x128xf32, #tpu.memory_space<vmem>>, %arg3: memref<1x128xf32, #tpu.memory_space<vmem>>, %arg4: memref<128x128xf32, #tpu.memory_space<vmem>>, %arg5: memref<1x128xf32, #tpu.memory_space<vmem>>, %arg6: memref<128x128xf32, #tpu.memory_space<vmem>>, %arg7: memref<8x128xf32, #tpu.memory_space<vmem>>) attributes {dimension_semantics = [#tpu.dimension_semantics<parallel>], iteration_bounds = array<i64: 1>, scalar_prefetch = 0 : i64, scratch_operands = 0 : i64, tpu.core_type = #tpu.core_type<tc>, window_params = [{transform_indices = @transform_0, window_bounds = array<i64: 8, 32>}, {pipeline_mode = #tpu.pipeline_mode<synchronous>, transform_indices = @transform_1, window_bounds = array<i64: 32, 128>}, {pipeline_mode = #tpu.pipeline_mode<synchronous>, transform_indices = @transform_2, window_bounds = array<i64: 1, 128>}, {pipeline_mode = #tpu.pipeline_mode<synchronous>, transform_indices = @transform_3, window_bounds = array<i64: 128, 128>}, {pipeline_mode = #tpu.pipeline_mode<synchronous>, transform_indices = @transform_4, window_bounds = array<i64: 1, 128>}, {pipeline_mode = #tpu.pipeline_mode<synchronous>, transform_indices = @transform_5, window_bounds = array<i64: 128, 128>}, {transform_indices = @transform_6, window_bounds = array<i64: 8, 128>}]} {
    %c0 = arith.constant 0 : index
    %c0_0 = arith.constant 0 : index
    %0 = vector.load %arg1[%c0, %c0_0] : memref<8x32xf32, #tpu.memory_space<vmem>>, vector<8x32xf32>
    %c0_1 = arith.constant 0 : index
    %c0_2 = arith.constant 0 : index
    %1 = vector.load %arg2[%c0_1, %c0_2] : memref<32x128xf32, #tpu.memory_space<vmem>>, vector<32x128xf32>
    %cst = arith.constant dense<0.000000e+00> : vector<8x128xf32>
    %2 = tpu.matmul %0, %1, %cst {dimension_numbers = #tpu.dot_dimension_numbers<[1], [0], [0], [1], [0, 0, 1, 1], [], []>} : vector<8x32xf32>, vector<32x128xf32>, vector<8x128xf32> -> vector<8x128xf32>
    %c0_3 = arith.constant 0 : index
    %c0_4 = arith.constant 0 : index
    %3 = vector.load %arg3[%c0_3, %c0_4] : memref<1x128xf32, #tpu.memory_space<vmem>>, vector<1x128xf32>
    %4 = vector.broadcast %3 : vector<1x128xf32> to vector<8x128xf32>
    %5 = arith.addf %2, %4 : vector<8x128xf32>
    %cst_5 = arith.constant 0.000000e+00 : f32
    %6 = vector.broadcast %cst_5 : f32 to vector<8x128xf32>
    %7 = arith.maximumf %5, %6 : vector<8x128xf32>
    %c0_6 = arith.constant 0 : index
    %c0_7 = arith.constant 0 : index
    %8 = vector.load %arg4[%c0_6, %c0_7] : memref<128x128xf32, #tpu.memory_space<vmem>>, vector<128x128xf32>
    %cst_8 = arith.constant dense<0.000000e+00> : vector<8x128xf32>
    %9 = tpu.matmul %7, %8, %cst_8 {dimension_numbers = #tpu.dot_dimension_numbers<[1], [0], [0], [1], [0, 0, 1, 1], [], []>} : vector<8x128xf32>, vector<128x128xf32>, vector<8x128xf32> -> vector<8x128xf32>
    %c0_9 = arith.constant 0 : index
    %c0_10 = arith.constant 0 : index
    %10 = vector.load %arg5[%c0_9, %c0_10] : memref<1x128xf32, #tpu.memory_space<vmem>>, vector<1x128xf32>
    %11 = vector.broadcast %10 : vector<1x128xf32> to vector<8x128xf32>
    %12 = arith.addf %9, %11 : vector<8x128xf32>
    %cst_11 = arith.constant 0.000000e+00 : f32
    %13 = vector.broadcast %cst_11 : f32 to vector<8x128xf32>
    %14 = arith.maximumf %12, %13 : vector<8x128xf32>
    %c0_12 = arith.constant 0 : index
    %c0_13 = arith.constant 0 : index
    %15 = vector.load %arg6[%c0_12, %c0_13] : memref<128x128xf32, #tpu.memory_space<vmem>>, vector<128x128xf32>
    %cst_14 = arith.constant dense<0.000000e+00> : vector<8x128xf32>
    %16 = tpu.matmul %14, %15, %cst_14 {dimension_numbers = #tpu.dot_dimension_numbers<[1], [0], [0], [1], [0, 0, 1, 1], [], []>} : vector<8x128xf32>, vector<128x128xf32>, vector<8x128xf32> -> vector<8x128xf32>
    %c0_15 = arith.constant 0 : index
    %c0_16 = arith.constant 0 : index
    %17 = vector.load %arg7[%c0_15, %c0_16] : memref<8x128xf32, #tpu.memory_space<vmem>>, vector<8x128xf32>
    tpu.vector_store %arg7[%c0_15, %c0_16], %16 {strides = array<i32>} : memref<8x128xf32, #tpu.memory_space<vmem>>, vector<8x128xf32>,
    return
  }
  func.func @transform_0(%arg0: i32) -> (i32, i32) {
    %c0_i32 = arith.constant 0 : i32
    %c0_i32_0 = arith.constant 0 : i32
    return %arg0, %c0_i32 : i32, i32
  }
  func.func @transform_1(%arg0: i32) -> (i32, i32) {
    %c0_i32 = arith.constant 0 : i32
    %c0_i32_0 = arith.constant 0 : i32
    %c0_i32_1 = arith.constant 0 : i32
    return %c0_i32, %c0_i32_0 : i32, i32
  }
  func.func @transform_2(%arg0: i32) -> (i32, i32) {
    %c0_i32 = arith.constant 0 : i32
    %c0_i32_0 = arith.constant 0 : i32
    %c0_i32_1 = arith.constant 0 : i32
    return %c0_i32, %c0_i32_0 : i32, i32
  }
  func.func @transform_3(%arg0: i32) -> (i32, i32) {
    %c0_i32 = arith.constant 0 : i32
    %c0_i32_0 = arith.constant 0 : i32
    %c0_i32_1 = arith.constant 0 : i32
    return %c0_i32, %c0_i32_0 : i32, i32
  }
  func.func @transform_4(%arg0: i32) -> (i32, i32) {
    %c0_i32 = arith.constant 0 : i32
    %c0_i32_0 = arith.constant 0 : i32
    %c0_i32_1 = arith.constant 0 : i32
    return %c0_i32, %c0_i32_0 : i32, i32
  }
  func.func @transform_5(%arg0: i32) -> (i32, i32) {
    %c0_i32 = arith.constant 0 : i32
    %c0_i32_0 = arith.constant 0 : i32
    %c0_i32_1 = arith.constant 0 : i32
    return %c0_i32, %c0_i32_0 : i32, i32
  }
  func.func @transform_6(%arg0: i32) -> (i32, i32) {
    %c0_i32 = arith.constant 0 : i32
    %c0_i32_0 = arith.constant 0 : i32
    return %arg0, %c0_i32 : i32, i32
  }
}

</mosaic_0001>

<llo_original>
// kernel: tpu_custom_call.1
$region0: #{tpu_custom_call.1}
  #allocation0 [shape = 'u32[]', space=smem, size = 0x4, offset = 0x4, fixed_abs, tag = 'smem constant byte address 0x4 - core index']
  #allocation1 [shape = 'u32[144,128]{1,0:T(1,128)}', space=vmem, size = 0x12000, scoped, tag = 'internal scratch']
  %s0 = inlined_call_operand.hbm [shape: f32[8,32], index: 0, kind: input, shape index: {}]
  %s1 = inlined_call_operand.hbm [shape: f32[32,128], index: 1, kind: input, shape index: {}]
  %s2 = inlined_call_operand.vmem [shape: f32[1,128], index: 2, kind: input, shape index: {}]
  %s3 = inlined_call_operand.hbm [shape: f32[128,128], index: 3, kind: input, shape index: {}]
  %s4 = inlined_call_operand.vmem [shape: f32[1,128], index: 4, kind: input, shape index: {}]
  %s5 = inlined_call_operand.hbm [shape: f32[128,128], index: 5, kind: input, shape index: {}]
  %s6 = inlined_call_operand.hbm [shape: f32[8,128], index: 6, kind: output, shape index: {}]
  %s7 = sld [smem:[#allocation0]]
  $region50: #{tpu_custom_call.1} parent=0
    _
  %s9 = ssub.s32 1, %s7
  %s10 = scalar_select 0, %s9, %s7
  $region1: #{tpu_custom_call.1} parent=0
    #allocation2 [shape = 'u8[4096]{0}', space=vmem, size = 0x1000, scoped, tag = 'input window, operand 0, single buffered']
    #allocation3 [shape = 's32[1]{0}', space=sflag, size = 0x4, scoped, tag = 'scoped memory for tpu_custom_call.1']
    #allocation4 [shape = 's32[1]{0}', space=sflag, size = 0x4, scoped, tag = 'scoped memory for tpu_custom_call.1']
    #allocation5 [shape = 'u8[16384]{0}', space=vmem, size = 0x4000, scoped, tag = 'input window, operand 1, single buffered']
    #allocation6 [shape = 's32[1]{0}', space=sflag, size = 0x4, scoped, tag = 'scoped memory for tpu_custom_call.1']
    #allocation7 [shape = 'u8[65536]{0}', space=vmem, size = 0x10000, scoped, tag = 'input window, operand 3, single buffered']
    #allocation8 [shape = 'u8[65536]{0}', space=vmem, size = 0x10000, scoped, tag = 'input window, operand 5, single buffered']
    #allocation9 [shape = 's32[1]{0}', space=sflag, size = 0x4, scoped, tag = 'scoped memory for tpu_custom_call.1']
    #allocation10 [shape = 'u8[4096]{0}', space=vmem, size = 0x1000, scoped, tag = 'output window, operand 0, single buffered']
    %11 = vsyncpa [#allocation3], 0
    %12 = vsyncpa [#allocation6], 0
    %13 = vsyncpa [#allocation9], 0
    %14 = vsyncpa [#allocation4], 0
    // Predicated region
    $region2: #{tpu_custom_call.1} parent=1 // pred_check
      _
    $region3: #{tpu_custom_call.1} parent=1 // pred_check_branch
      %16 = sbr.rel (0) target = $region5
    $region4: #{tpu_custom_call.1} parent=1 // pred_region
      %s18 = ssub.s32 128, 128
      %19 = vsyncadd [#allocation3], %s18
      %s21 = sshll.u32 [#allocation2], 4
      %s22 = int_to_ptr.vmem [resolvable:$true] %s21
      %24 = dma.hbm_to_vmem [thread:$0]  %s0, 128, %s22, [#allocation3]
    $region5: #{tpu_custom_call.1} parent=1 // pred_fallthru
      _
    // Predicated region
    $region6: #{tpu_custom_call.1} parent=1 // pred_check
      _
    $region7: #{tpu_custom_call.1} parent=1 // pred_check_branch
      %26 = sbr.rel (0) target = $region9
    $region8: #{tpu_custom_call.1} parent=1 // pred_region
      %s28 = ssub.s32 512, 512
      %29 = vsyncadd [#allocation6], %s28
      %s30 = sshll.u32 [#allocation5], 4
      %s31 = int_to_ptr.vmem [resolvable:$true] %s30
      %36 = dma.hbm_to_vmem [thread:$0]  %s1, 512, %s31, [#allocation6], 128, 128, 8
    $region9: #{tpu_custom_call.1} parent=1 // pred_fallthru
      _
    // Predicated region
    $region10: #{tpu_custom_call.1} parent=1 // pred_check
      _
    $region11: #{tpu_custom_call.1} parent=1 // pred_check_branch
      %38 = sbr.rel (0) target = $region13
    $region12: #{tpu_custom_call.1} parent=1 // pred_region
      _
    $region13: #{tpu_custom_call.1} parent=1 // pred_fallthru
      _
    // Predicated region
    $region14: #{tpu_custom_call.1} parent=1 // pred_check
      _
    $region15: #{tpu_custom_call.1} parent=1 // pred_check_branch
      %40 = sbr.rel (0) target = $region17
    $region16: #{tpu_custom_call.1} parent=1 // pred_region
      %s42 = ssub.s32 2048, 2048
      %43 = vsyncadd [#allocation6], %s42
      %s44 = sshll.u32 [#allocation7], 4
      %s45 = int_to_ptr.vmem [resolvable:$true] %s44
      %50 = dma.hbm_to_vmem [thread:$0]  %s3, 2048, %s45, [#allocation6], 128, 128, 8
    $region17: #{tpu_custom_call.1} parent=1 // pred_fallthru
      _
    // Predicated region
    $region18: #{tpu_custom_call.1} parent=1 // pred_check
      _
    $region19: #{tpu_custom_call.1} parent=1 // pred_check_branch
      %52 = sbr.rel (0) target = $region21
    $region20: #{tpu_custom_call.1} parent=1 // pred_region
      _
    $region21: #{tpu_custom_call.1} parent=1 // pred_fallthru
      _
    // Predicated region
    $region22: #{tpu_custom_call.1} parent=1 // pred_check
      _
    $region23: #{tpu_custom_call.1} parent=1 // pred_check_branch
      %54 = sbr.rel (0) target = $region25
    $region24: #{tpu_custom_call.1} parent=1 // pred_region
      %s56 = ssub.s32 2048, 2048
      %57 = vsyncadd [#allocation9], %s56
      %s58 = sshll.u32 [#allocation8], 4
      %s59 = int_to_ptr.vmem [resolvable:$true] %s58
      %64 = dma.hbm_to_vmem [thread:$0]  %s5, 2048, %s59, [#allocation9], 128, 128, 8
    $region25: #{tpu_custom_call.1} parent=1 // pred_fallthru
      _
    // Predicated region
    $region26: #{tpu_custom_call.1} parent=1 // pred_check
      _
    $region27: #{tpu_custom_call.1} parent=1 // pred_check_branch
      %66 = sbr.rel (0) target = $region29
    $region28: #{tpu_custom_call.1} parent=1 // pred_region
      %67 = dma.done [#allocation3], 128
    $region29: #{tpu_custom_call.1} parent=1 // pred_fallthru
      _
    // Predicated region
    $region30: #{tpu_custom_call.1} parent=1 // pred_check
      _
    $region31: #{tpu_custom_call.1} parent=1 // pred_check_branch
      %69 = sbr.rel (0) target = $region33
    $region32: #{tpu_custom_call.1} parent=1 // pred_region
      %70 = dma.done [#allocation6], 512
    $region33: #{tpu_custom_call.1} parent=1 // pred_fallthru
      _
    // Predicated region
    $region34: #{tpu_custom_call.1} parent=1 // pred_check
      _
    $region35: #{tpu_custom_call.1} parent=1 // pred_check_branch
      %72 = sbr.rel (0) target = $region37
    $region36: #{tpu_custom_call.1} parent=1 // pred_region
      %73 = dma.done [#allocation6], 2048
    $region37: #{tpu_custom_call.1} parent=1 // pred_fallthru
      _
    // Predicated region
    $region38: #{tpu_custom_call.1} parent=1 // pred_check
      _
    $region39: #{tpu_custom_call.1} parent=1 // pred_check_branch
      %75 = sbr.rel (0) target = $region41
    $region40: #{tpu_custom_call.1} parent=1 // pred_region
      %76 = dma.done [#allocation9], 2048
    $region41: #{tpu_custom_call.1} parent=1 // pred_fallthru
      _
    %v77 = vld [vmem:[#allocation2] sm:$0xff]
    %v78 = vld [vmem:[#allocation5] sm:$0xff]
    %v79 = vld [vmem:[#allocation5 + $0x8] sm:$0xff]
    %v80 = vld [vmem:[#allocation5 + $0x10] sm:$0xff]
    %v81 = vld [vmem:[#allocation5 + $0x18] sm:$0xff]
    %v82 = vld [vmem:[%s2] sm:$0x1]
    %v84 = vlaneseq
    %v85 = vshrl.u32 %v84, 7
    %v86 = vsub.s32 0, %v85
    %v87 = vrot.slane %v82, %v86
    %vm89 = vcmask 261120
    %v91 = vsel %vm89, %v77, 0
    %93 = vmatprep.subr.mxu0 0.0
    %94 = vmatpush1.msra.mxu0 0.0
    %95 = vmatprep.subr.mxu0 0.0
    %96 = vmatpush1.msra.mxu0 0.0
    %97 = vmatprep.subr.mxu0 0.0
    %98 = vmatpush1.msra.mxu0 0.0
    %99 = vmatprep.subr.mxu0 0.0
    %100 = vmatpush1.msra.mxu0 0.0
    %101 = vmatprep.subr.mxu0 0.0
    %102 = vmatpush1.msra.mxu0 0.0
    %103 = vmatprep.subr.mxu0 0.0
    %104 = vmatpush1.msra.mxu0 0.0
    %105 = vmatprep.subr.mxu0 0.0
    %106 = vmatpush1.msra.mxu0 0.0
    %107 = vmatprep.subr.mxu0 0.0
    %108 = vmatpush1.msra.mxu0 0.0
    %109 = vmatprep.subr.mxu0 0.0
    %110 = vmatpush1.msra.mxu0 0.0
    %111 = vmatprep.subr.mxu0 0.0
    %112 = vmatpush1.msra.mxu0 0.0
    %113 = vmatprep.subr.mxu0 0.0
    %114 = vmatpush1.msra.mxu0 0.0
    %115 = vmatprep.subr.mxu0 0.0
    %116 = vmatpush1.msra.mxu0 0.0
    %117 = vmatprep.subr.mxu0 0.0
    %118 = vmatpush1.msra.mxu0 %v81
    %119 = vmatprep.subr.mxu0 0.0
    %120 = vmatpush1.msra.mxu0 %v80
    %121 = vmatprep.subr.mxu0 0.0
    %122 = vmatpush1.msra.mxu0 %v79
    %123 = vmatprep.subr.mxu0 0.0
    %124 = vmatpush1.msra.mxu0 %v78
    %125 = vmatprep.subr.mxu0 0.0
    %126 = vmatpush2.msra.mxu0 0.0
    %127 = vmatprep.subr.mxu0 0.0
    %128 = vmatpush2.msra.mxu0 0.0
    %129 = vmatprep.subr.mxu0 0.0
    %130 = vmatpush2.msra.mxu0 0.0
    %131 = vmatprep.subr.mxu0 0.0
    %132 = vmatpush2.msra.mxu0 0.0
    %133 = vmatprep.subr.mxu0 0.0
    %134 = vmatpush2.msra.mxu0 0.0
    %135 = vmatprep.subr.mxu0 0.0
    %136 = vmatpush2.msra.mxu0 0.0
    %137 = vmatprep.subr.mxu0 0.0
    %138 = vmatpush2.msra.mxu0 0.0
    %139 = vmatprep.subr.mxu0 0.0
    %140 = vmatpush2.msra.mxu0 0.0
    %141 = vmatprep.subr.mxu0 0.0
    %142 = vmatpush2.msra.mxu0 0.0
    %143 = vmatprep.subr.mxu0 0.0
    %144 = vmatpush2.msra.mxu0 0.0
    %145 = vmatprep.subr.mxu0 0.0
    %146 = vmatpush2.msra.mxu0 0.0
    %147 = vmatprep.subr.mxu0 0.0
    %148 = vmatpush2.msra.mxu0 0.0
    %149 = vmatprep.subr.mxu0 0.0
    %150 = vmatpush2.msra.mxu0 0.0
    %151 = vmatprep.subr.mxu0 0.0
    %152 = vmatpush2.msra.mxu0 0.0
    %153 = vmatprep.subr.mxu0 0.0
    %154 = vmatpush2.msra.mxu0 0.0
    %155 = vmatprep.subr.mxu0 0.0
    %156 = vmatpush2.msra.mxu0 0.0
    %157 = vmatprep.mubr.f32.mxu0 0.0
    %158 = vmatmul.mubr.f32.gmra.mxu0 %v91
    %v159 = vpop.f32.mrf.mxu0
    %v160 = vadd.f32 %v87, %v159
    %v161 = vpop.f32.mrf.mxu0
    %162 = vdwg.mxu0
    %v163 = vmax.f32 %v160, 0.0
    %v164 = vld [vmem:[#allocation7] sm:$0xff]
    %v165 = vld [vmem:[#allocation7 + $0x8] sm:$0xff]
    %v166 = vld [vmem:[#allocation7 + $0x10] sm:$0xff]
    %v167 = vld [vmem:[#allocation7 + $0x18] sm:$0xff]
    %v168 = vld [vmem:[#allocation7 + $0x20] sm:$0xff]
    %v169 = vld [vmem:[#allocation7 + $0x28] sm:$0xff]
    %v170 = vld [vmem:[#allocation7 + $0x30] sm:$0xff]
    %v171 = vld [vmem:[#allocation7 + $0x38] sm:$0xff]
    %v172 = vld [vmem:[#allocation7 + $0x40] sm:$0xff]
    %v173 = vld [vmem:[#allocation7 + $0x48] sm:$0xff]
    %v174 = vld [vmem:[#allocation7 + $0x50] sm:$0xff]
    %v175 = vld [vmem:[#allocation7 + $0x58] sm:$0xff]
    %v176 = vld [vmem:[#allocation7 + $0x60] sm:$0xff]
    %v177 = vld [vmem:[#allocation7 + $0x68] sm:$0xff]
    %v178 = vld [vmem:[#allocation7 + $0x70] sm:$0xff]
    %v179 = vld [vmem:[#allocation7 + $0x78] sm:$0xff]
    %v180 = vld [vmem:[%s4] sm:$0x1]
    %v182 = vlaneseq
    %v183 = vshrl.u32 %v182, 7
    %v184 = vsub.s32 0, %v183
    %v185 = vrot.slane %v180, %v184
    %187 = vmatprep.subr.mxu0 0.0
    %188 = vmatpush1.msra.mxu0 %v179
    %189 = vmatprep.subr.mxu0 0.0
    %190 = vmatpush1.msra.mxu0 %v178
    %191 = vmatprep.subr.mxu0 0.0
    %192 = vmatpush1.msra.mxu0 %v177
    %193 = vmatprep.subr.mxu0 0.0
    %194 = vmatpush1.msra.mxu0 %v176
    %195 = vmatprep.subr.mxu0 0.0
    %196 = vmatpush1.msra.mxu0 %v175
    %197 = vmatprep.subr.mxu0 0.0
    %198 = vmatpush1.msra.mxu0 %v174
    %199 = vmatprep.subr.mxu0 0.0
    %200 = vmatpush1.msra.mxu0 %v173
    %201 = vmatprep.subr.mxu0 0.0
    %202 = vmatpush1.msra.mxu0 %v172
    %203 = vmatprep.subr.mxu0 0.0
    %204 = vmatpush1.msra.mxu0 %v171
    %205 = vmatprep.subr.mxu0 0.0
    %206 = vmatpush1.msra.mxu0 %v170
    %207 = vmatprep.subr.mxu0 0.0
    %208 = vmatpush1.msra.mxu0 %v169
    %209 = vmatprep.subr.mxu0 0.0
    %210 = vmatpush1.msra.mxu0 %v168
    %211 = vmatprep.subr.mxu0 0.0
    %212 = vmatpush1.msra.mxu0 %v167
    %213 = vmatprep.subr.mxu0 0.0
    %214 = vmatpush1.msra.mxu0 %v166
    %215 = vmatprep.subr.mxu0 0.0
    %216 = vmatpush1.msra.mxu0 %v165
    %217 = vmatprep.subr.mxu0 0.0
    %218 = vmatpush1.msra.mxu0 %v164
    %219 = vmatprep.subr.mxu0 0.0
    %220 = vmatpush2.msra.mxu0 0.0
    %221 = vmatprep.subr.mxu0 0.0
    %222 = vmatpush2.msra.mxu0 0.0
    %223 = vmatprep.subr.mxu0 0.0
    %224 = vmatpush2.msra.mxu0 0.0
    %225 = vmatprep.subr.mxu0 0.0
    %226 = vmatpush2.msra.mxu0 0.0
    %227 = vmatprep.subr.mxu0 0.0
    %228 = vmatpush2.msra.mxu0 0.0
    %229 = vmatprep.subr.mxu0 0.0
    %230 = vmatpush2.msra.mxu0 0.0
    %231 = vmatprep.subr.mxu0 0.0
    %232 = vmatpush2.msra.mxu0 0.0
    %233 = vmatprep.subr.mxu0 0.0
    %234 = vmatpush2.msra.mxu0 0.0
    %235 = vmatprep.subr.mxu0 0.0
    %236 = vmatpush2.msra.mxu0 0.0
    %237 = vmatprep.subr.mxu0 0.0
    %238 = vmatpush2.msra.mxu0 0.0
    %239 = vmatprep.subr.mxu0 0.0
    %240 = vmatpush2.msra.mxu0 0.0
    %241 = vmatprep.subr.mxu0 0.0
    %242 = vmatpush2.msra.mxu0 0.0
    %243 = vmatprep.subr.mxu0 0.0
    %244 = vmatpush2.msra.mxu0 0.0
    %245 = vmatprep.subr.mxu0 0.0
    %246 = vmatpush2.msra.mxu0 0.0
    %247 = vmatprep.subr.mxu0 0.0
    %248 = vmatpush2.msra.mxu0 0.0
    %249 = vmatprep.subr.mxu0 0.0
    %250 = vmatpush2.msra.mxu0 0.0
    %251 = vmatprep.mubr.f32.mxu0 0.0
    %252 = vmatmul.mubr.f32.gmra.mxu0 %v163
    %v253 = vpop.f32.mrf.mxu0
    %v254 = vadd.f32 %v185, %v253
    %v255 = vpop.f32.mrf.mxu0
    %256 = vdwg.mxu0
    %v257 = vmax.f32 %v254, 0.0
    %v258 = vld [vmem:[#allocation8] sm:$0xff]
    %v259 = vld [vmem:[#allocation8 + $0x8] sm:$0xff]
    %v260 = vld [vmem:[#allocation8 + $0x10] sm:$0xff]
    %v261 = vld [vmem:[#allocation8 + $0x18] sm:$0xff]
    %v262 = vld [vmem:[#allocation8 + $0x20] sm:$0xff]
    %v263 = vld [vmem:[#allocation8 + $0x28] sm:$0xff]
    %v264 = vld [vmem:[#allocation8 + $0x30] sm:$0xff]
    %v265 = vld [vmem:[#allocation8 + $0x38] sm:$0xff]
    %v266 = vld [vmem:[#allocation8 + $0x40] sm:$0xff]
    %v267 = vld [vmem:[#allocation8 + $0x48] sm:$0xff]
    %v268 = vld [vmem:[#allocation8 + $0x50] sm:$0xff]
    %v269 = vld [vmem:[#allocation8 + $0x58] sm:$0xff]
    %v270 = vld [vmem:[#allocation8 + $0x60] sm:$0xff]
    %v271 = vld [vmem:[#allocation8 + $0x68] sm:$0xff]
    %v272 = vld [vmem:[#allocation8 + $0x70] sm:$0xff]
    %v273 = vld [vmem:[#allocation8 + $0x78] sm:$0xff]
    %274 = vmatprep.subr.mxu0 0.0
    %275 = vmatpush1.msra.mxu0 %v273
    %276 = vmatprep.subr.mxu0 0.0
    %277 = vmatpush1.msra.mxu0 %v272
    %278 = vmatprep.subr.mxu0 0.0
    %279 = vmatpush1.msra.mxu0 %v271
    %280 = vmatprep.subr.mxu0 0.0
    %281 = vmatpush1.msra.mxu0 %v270
    %282 = vmatprep.subr.mxu0 0.0
    %283 = vmatpush1.msra.mxu0 %v269
    %284 = vmatprep.subr.mxu0 0.0
    %285 = vmatpush1.msra.mxu0 %v268
    %286 = vmatprep.subr.mxu0 0.0
    %287 = vmatpush1.msra.mxu0 %v267
    %288 = vmatprep.subr.mxu0 0.0
    %289 = vmatpush1.msra.mxu0 %v266
    %290 = vmatprep.subr.mxu0 0.0
    %291 = vmatpush1.msra.mxu0 %v265
    %292 = vmatprep.subr.mxu0 0.0
    %293 = vmatpush1.msra.mxu0 %v264
    %294 = vmatprep.subr.mxu0 0.0
    %295 = vmatpush1.msra.mxu0 %v263
    %296 = vmatprep.subr.mxu0 0.0
    %297 = vmatpush1.msra.mxu0 %v262
    %298 = vmatprep.subr.mxu0 0.0
    %299 = vmatpush1.msra.mxu0 %v261
    %300 = vmatprep.subr.mxu0 0.0
    %301 = vmatpush1.msra.mxu0 %v260
    %302 = vmatprep.subr.mxu0 0.0
    %303 = vmatpush1.msra.mxu0 %v259
    %304 = vmatprep.subr.mxu0 0.0
    %305 = vmatpush1.msra.mxu0 %v258
    %306 = vmatprep.subr.mxu0 0.0
    %307 = vmatpush2.msra.mxu0 0.0
    %308 = vmatprep.subr.mxu0 0.0
    %309 = vmatpush2.msra.mxu0 0.0
    %310 = vmatprep.subr.mxu0 0.0
    %311 = vmatpush2.msra.mxu0 0.0
    %312 = vmatprep.subr.mxu0 0.0
    %313 = vmatpush2.msra.mxu0 0.0
    %314 = vmatprep.subr.mxu0 0.0
    %315 = vmatpush2.msra.mxu0 0.0
    %316 = vmatprep.subr.mxu0 0.0
    %317 = vmatpush2.msra.mxu0 0.0
    %318 = vmatprep.subr.mxu0 0.0
    %319 = vmatpush2.msra.mxu0 0.0
    %320 = vmatprep.subr.mxu0 0.0
    %321 = vmatpush2.msra.mxu0 0.0
    %322 = vmatprep.subr.mxu0 0.0
    %323 = vmatpush2.msra.mxu0 0.0
    %324 = vmatprep.subr.mxu0 0.0
    %325 = vmatpush2.msra.mxu0 0.0
    %326 = vmatprep.subr.mxu0 0.0
    %327 = vmatpush2.msra.mxu0 0.0
    %328 = vmatprep.subr.mxu0 0.0
    %329 = vmatpush2.msra.mxu0 0.0
    %330 = vmatprep.subr.mxu0 0.0
    %331 = vmatpush2.msra.mxu0 0.0
    %332 = vmatprep.subr.mxu0 0.0
    %333 = vmatpush2.msra.mxu0 0.0
    %334 = vmatprep.subr.mxu0 0.0
    %335 = vmatpush2.msra.mxu0 0.0
    %336 = vmatprep.subr.mxu0 0.0
    %337 = vmatpush2.msra.mxu0 0.0
    %338 = vmatprep.mubr.f32.mxu0 0.0
    %339 = vmatmul.mubr.f32.gmra.mxu0 %v257
    %v340 = vpop.f32.mrf.mxu0
    %v341 = vadd.f32 0.0, %v340
    %v342 = vpop.f32.mrf.mxu0
    %343 = vdwg.mxu0
    %344 = vst [vmem:[#allocation10] sm:$0xff] %v341
    // Predicated region
    $region42: #{tpu_custom_call.1} parent=1 // pred_check
      _
    $region43: #{tpu_custom_call.1} parent=1 // pred_check_branch
      %346 = sbr.rel (0) target = $region45
    $region44: #{tpu_custom_call.1} parent=1 // pred_region
      %s348 = ssub.s32 128, 128
      %349 = vsyncadd [#allocation4], %s348
      %s351 = sshll.u32 [#allocation10], 4
      %s352 = int_to_ptr.vmem [resolvable:$true] %s351
      %354 = dma.vmem_to_hbm [thread:$0]  %s352, 128, %s6, [#allocation4]
    $region45: #{tpu_custom_call.1} parent=1 // pred_fallthru
      _
    // Predicated region
    $region46: #{tpu_custom_call.1} parent=1 // pred_check
      _
    $region47: #{tpu_custom_call.1} parent=1 // pred_check_branch
      %356 = sbr.rel (0) target = $region49
    $region48: #{tpu_custom_call.1} parent=1 // pred_region
      %357 = dma.done [#allocation4], 128
    $region49: #{tpu_custom_call.1} parent=1 // pred_fallthru
      _
    %358 = vsyncpa [#allocation3], 1
    %359 = vsyncpa [#allocation6], 1
    %360 = vsyncpa [#allocation9], 1
    %361 = vsyncpa [#allocation4], 1

</llo_original>
